<compile_context>
chip_gen: v6e
topology: v6e:2x2x1
jax: 0.10.0
libtpu: 0.0.40
codegen_flags: <defaults>
</compile_context>

<pallas_src>
import jax
import jax.numpy as jnp
from jax.experimental import pallas as pl
from jax.experimental.pallas import tpu as pltpu

EPSILON = 1e-06        # defined in the original module; unused in forward()
LOG_SIG_MAX = 2.0
LOG_SIG_MIN = -20.0


def _round_up(n, m):
    return ((n + m - 1) // m) * m


def _mediator_kernel(xt_ref, yt_ref, wxt_ref, wyt_ref, b_ref, out_ref):
    """Lane-dense fused two-head linear.

    xt_ref: (dx, tb)   x^T tile            (batch on lanes)
    yt_ref: (dy, tb)   y^T tile
    wxt_ref: (2A, dx)  fused weight rows for x   (resident across grid)
    wyt_ref: (2A, dy)  fused weight rows for y   (resident across grid)
    b_ref:  (2A, 1)    fused bias                (resident across grid)
    out_ref: (2A, tb)  rows [0,A) = mean, rows [A,2A) = std
    """
    two_a, tb = out_ref.shape
    a = two_a // 2

    xt = xt_ref[...]
    yt = yt_ref[...]
    wx = wxt_ref[...]
    wy = wyt_ref[...]

    # K = dx + dy is tiny (8): do the contraction as VPU broadcast-FMAs
    # (outer products) instead of an MXU matmul whose push/pop latency would
    # dominate such a small contraction.
    z = jnp.broadcast_to(b_ref[...], (two_a, tb)).astype(jnp.float32)
    for k in range(xt_ref.shape[0]):
        z = z + wx[:, k:k + 1] * xt[k:k + 1, :]
    for k in range(yt_ref.shape[0]):
        z = z + wy[:, k:k + 1] * yt[k:k + 1, :]

    # Rows [0, A): mean head (identity).  Rows [A, 2A): log_std -> std.
    # clip-before-exp keeps everything finite even for garbage lanes in the
    # ragged tail block (those columns are dropped on store anyway).
    rows = jax.lax.broadcasted_iota(jnp.int32, (two_a, tb), 0)
    std_all = jnp.exp(jnp.clip(z, LOG_SIG_MIN, LOG_SIG_MAX))
    out_ref[...] = jnp.where(rows < a, z, std_all)


def mediator_forward_t(x_t, y_t, packed, *, block_b=8192):
    """Native lane-dense forward.

    x_t: [dx, B], y_t: [dy, B] (batch-last) -> (mean_t [A, B], std_t [A, B]).
    """
    x_t = x_t.astype(jnp.float32)
    y_t = y_t.astype(jnp.float32)
    dx, B = x_t.shape
    dy = y_t.shape[0]
    two_a = packed["b"].shape[0]
    a = two_a // 2

    # Lane-axis tile: multiple of 128 (or full B when tiny).  Guarantee >= 2
    # grid steps whenever B > 128 so both v7x TensorCores get work.
    block_b = max(128, _round_up(block_b, 128))
    if B <= 128:
        tb = B
    else:
        tb = min(block_b, _round_up(pl.cdiv(B, 2), 128))
    grid = (pl.cdiv(B, tb),)

    out_t = pl.pallas_call(
        _mediator_kernel,
        out_shape=jax.ShapeDtypeStruct((two_a, B), jnp.float32),
        grid=grid,
        in_specs=[
            pl.BlockSpec((dx, tb), lambda i: (0, i)),       # x^T tile
            pl.BlockSpec((dy, tb), lambda i: (0, i)),       # y^T tile
            pl.BlockSpec((two_a, dx), lambda i: (0, 0)),    # resident weights
            pl.BlockSpec((two_a, dy), lambda i: (0, 0)),    # resident weights
            pl.BlockSpec((two_a, 1), lambda i: (0, 0)),     # resident bias
        ],
        out_specs=pl.BlockSpec((two_a, tb), lambda i: (0, i)),
        compiler_params=pltpu.CompilerParams(
            dimension_semantics=("parallel",),              # shard batch over TCs
            vmem_limit_bytes=48 * 1024 * 1024,              # safe on v5e/v6e/v7x
        ),
    )(x_t, y_t, packed["wxT"], packed["wyT"], packed["b"])

    return out_t[:a], out_t[a:]


def mediator_forward(x_player_action, y_player_action, packed, *, block_b=8192):
    """Spec-compatible entry point: [B, dx]/[B, dy] in, ([B, A], [B, A]) out.

    The transposes here exist only for API parity with the PyTorch module; in
    a real pipeline keep activations batch-last and call mediator_forward_t
    directly to stay fully lane-dense end to end.
    """
    x_t = x_player_action.astype(jnp.float32).T
    y_t = y_player_action.astype(jnp.float32).T
    mean_t, std_t = mediator_forward_t(x_t, y_t, packed, block_b=block_b)
    return mean_t.T, std_t.T


def _xavier_uniform(key, out_features, in_features, gain=1.0):
    # Matches torch.nn.init.xavier_uniform_ on a [out, in] Linear weight.
    limit = gain * jnp.sqrt(6.0 / (in_features + out_features))
    return jax.random.uniform(key, (out_features, in_features),
                              minval=-limit, maxval=limit, dtype=jnp.float32)


def init_mediator_params(key, input_dim, action_dim):
    k1, k2 = jax.random.split(key)
    wm_torch = _xavier_uniform(k1, action_dim, input_dim)    # torch layout [A, D]
    ws_torch = _xavier_uniform(k2, action_dim, input_dim)
    return {
        "wm": wm_torch.T,                                    # [D, A]
        "bm": jnp.zeros((action_dim,), jnp.float32),
        "ws": ws_torch.T,                                    # [D, A]
        "bs": jnp.zeros((action_dim,), jnp.float32),
    }


def prepare_mediator_params(params, x_dim):
    """Pack both heads into one transposed fused weight/bias ONCE (not per call)."""
    w_fused = jnp.concatenate([params["wm"], params["ws"]], axis=1)   # [D, 2A]
    w_t = w_fused.T.astype(jnp.float32)                               # [2A, D]
    b = jnp.concatenate([params["bm"], params["bs"]]).astype(jnp.float32)
    return {
        "wxT": w_t[:, :x_dim],          # [2A, dx]  (rows of W for x features)
        "wyT": w_t[:, x_dim:],          # [2A, dy]  (rows of W for y features)
        "b": b.reshape(-1, 1),          # [2A, 1]
    }


def _reference(x, y, params):
    obs = jnp.concatenate([x, y], axis=1)
    mean = obs @ params["wm"] + params["bm"]
    std = jnp.exp(jnp.clip(obs @ params["ws"] + params["bs"],
                           LOG_SIG_MIN, LOG_SIG_MAX))
    return mean, std


# TODO(synk): Mediator.act() (Normal rsample, tanh squash, log_prob correction)
# is not part of forward() and is not implemented here.

if __name__ == "__main__":
    key = jax.random.PRNGKey(0)
    k_params, k_x, k_y, k_x2, k_y2 = jax.random.split(key, 5)

    batch = 2
    x_dim = 4          # x_player_action features
    y_dim = 4          # y_player_action features
    input_dim = x_dim + y_dim
    action_dim = 4

    params = init_mediator_params(k_params, input_dim, action_dim)
    packed = prepare_mediator_params(params, x_dim)      # pack once, reuse per call

    # Small-batch path: single whole-array block, grid=(1,).
    x_small = jax.random.normal(k_x, (batch, x_dim), dtype=jnp.float32)
    y_small = jax.random.normal(k_y, (batch, y_dim), dtype=jnp.float32)
    mean, std = mediator_forward(x_small, y_small, packed)
    jax.block_until_ready((mean, std))

    mean_ref, std_ref = _reference(x_small, y_small, params)
    assert jnp.allclose(mean, mean_ref, atol=1e-5), "mean mismatch (small batch)"
    assert jnp.allclose(std, std_ref, atol=1e-5), "std mismatch (small batch)"

    # Larger ragged batch: >= 2 grid steps, no pad/slice, masked tail block.
    big_b = 1030
    x_big = jax.random.normal(k_x2, (big_b, x_dim), dtype=jnp.float32)
    y_big = jax.random.normal(k_y2, (big_b, y_dim), dtype=jnp.float32)
    mean_b, std_b = mediator_forward(x_big, y_big, packed)
    jax.block_until_ready((mean_b, std_b))

    mean_b_ref, std_b_ref = _reference(x_big, y_big, params)
    assert jnp.allclose(mean_b, mean_b_ref, atol=1e-5), "mean mismatch (tiled batch)"
    assert jnp.allclose(std_b, std_b_ref, atol=1e-5), "std mismatch (tiled batch)"

    print("KERNEL_OK")
</pallas_src>

<mosaic_0001>
module attributes {stable_mosaic.version = 11 : i64} {
  func.func @_mediator_kernel(%arg0: i32, %arg1: memref<4x2xf32, #tpu.memory_space<vmem>>, %arg2: memref<4x2xf32, #tpu.memory_space<vmem>>, %arg3: memref<8x4xf32, #tpu.memory_space<vmem>>, %arg4: memref<8x4xf32, #tpu.memory_space<vmem>>, %arg5: memref<8x1xf32, #tpu.memory_space<vmem>>, %arg6: memref<8x2xf32, #tpu.memory_space<vmem>>) attributes {dimension_semantics = [#tpu.dimension_semantics<parallel>], iteration_bounds = array<i64: 1>, scalar_prefetch = 0 : i64, scratch_operands = 0 : i64, tpu.core_type = #tpu.core_type<tc>, window_params = [{transform_indices = @transform_0, window_bounds = array<i64: 4, 2>}, {transform_indices = @transform_1, window_bounds = array<i64: 4, 2>}, {pipeline_mode = #tpu.pipeline_mode<synchronous>, transform_indices = @transform_2, window_bounds = array<i64: 8, 4>}, {pipeline_mode = #tpu.pipeline_mode<synchronous>, transform_indices = @transform_3, window_bounds = array<i64: 8, 4>}, {pipeline_mode = #tpu.pipeline_mode<synchronous>, transform_indices = @transform_4, window_bounds = array<i64: 8, 1>}, {transform_indices = @transform_5, window_bounds = array<i64: 8, 2>}]} {
    %c0 = arith.constant 0 : index
    %c0_0 = arith.constant 0 : index
    %0 = vector.load %arg1[%c0, %c0_0] : memref<4x2xf32, #tpu.memory_space<vmem>>, vector<4x2xf32>
    %c0_1 = arith.constant 0 : index
    %c0_2 = arith.constant 0 : index
    %1 = vector.load %arg2[%c0_1, %c0_2] : memref<4x2xf32, #tpu.memory_space<vmem>>, vector<4x2xf32>
    %c0_3 = arith.constant 0 : index
    %c0_4 = arith.constant 0 : index
    %2 = vector.load %arg3[%c0_3, %c0_4] : memref<8x4xf32, #tpu.memory_space<vmem>>, vector<8x4xf32>
    %c0_5 = arith.constant 0 : index
    %c0_6 = arith.constant 0 : index
    %3 = vector.load %arg4[%c0_5, %c0_6] : memref<8x4xf32, #tpu.memory_space<vmem>>, vector<8x4xf32>
    %c0_7 = arith.constant 0 : index
    %c0_8 = arith.constant 0 : index
    %4 = vector.load %arg5[%c0_7, %c0_8] : memref<8x1xf32, #tpu.memory_space<vmem>>, vector<8x1xf32>
    %5 = vector.shape_cast %4 : vector<8x1xf32> to vector<8x1xf32>
    %6 = vector.broadcast %5 : vector<8x1xf32> to vector<8x2xf32>
    %7 = vector.extract_strided_slice %2 {offsets = [0, 0], sizes = [8, 1], strides = [1, 1]} : vector<8x4xf32> to vector<8x1xf32>
    %8 = vector.extract_strided_slice %0 {offsets = [0, 0], sizes = [1, 2], strides = [1, 1]} : vector<4x2xf32> to vector<1x2xf32>
    %9 = vector.broadcast %7 : vector<8x1xf32> to vector<8x2xf32>
    %10 = vector.broadcast %8 : vector<1x2xf32> to vector<8x2xf32>
    %11 = arith.mulf %9, %10 : vector<8x2xf32>
    %12 = arith.addf %6, %11 : vector<8x2xf32>
    %13 = vector.extract_strided_slice %2 {offsets = [0, 1], sizes = [8, 1], strides = [1, 1]} : vector<8x4xf32> to vector<8x1xf32>
    %14 = vector.extract_strided_slice %0 {offsets = [1, 0], sizes = [1, 2], strides = [1, 1]} : vector<4x2xf32> to vector<1x2xf32>
    %15 = vector.broadcast %13 : vector<8x1xf32> to vector<8x2xf32>
    %16 = vector.broadcast %14 : vector<1x2xf32> to vector<8x2xf32>
    %17 = arith.mulf %15, %16 : vector<8x2xf32>
    %18 = arith.addf %12, %17 : vector<8x2xf32>
    %19 = vector.extract_strided_slice %2 {offsets = [0, 2], sizes = [8, 1], strides = [1, 1]} : vector<8x4xf32> to vector<8x1xf32>
    %20 = vector.extract_strided_slice %0 {offsets = [2, 0], sizes = [1, 2], strides = [1, 1]} : vector<4x2xf32> to vector<1x2xf32>
    %21 = vector.broadcast %19 : vector<8x1xf32> to vector<8x2xf32>
    %22 = vector.broadcast %20 : vector<1x2xf32> to vector<8x2xf32>
    %23 = arith.mulf %21, %22 : vector<8x2xf32>
    %24 = arith.addf %18, %23 : vector<8x2xf32>
    %25 = vector.extract_strided_slice %2 {offsets = [0, 3], sizes = [8, 1], strides = [1, 1]} : vector<8x4xf32> to vector<8x1xf32>
    %26 = vector.extract_strided_slice %0 {offsets = [3, 0], sizes = [1, 2], strides = [1, 1]} : vector<4x2xf32> to vector<1x2xf32>
    %27 = vector.broadcast %25 : vector<8x1xf32> to vector<8x2xf32>
    %28 = vector.broadcast %26 : vector<1x2xf32> to vector<8x2xf32>
    %29 = arith.mulf %27, %28 : vector<8x2xf32>
    %30 = arith.addf %24, %29 : vector<8x2xf32>
    %31 = vector.extract_strided_slice %3 {offsets = [0, 0], sizes = [8, 1], strides = [1, 1]} : vector<8x4xf32> to vector<8x1xf32>
    %32 = vector.extract_strided_slice %1 {offsets = [0, 0], sizes = [1, 2], strides = [1, 1]} : vector<4x2xf32> to vector<1x2xf32>
    %33 = vector.broadcast %31 : vector<8x1xf32> to vector<8x2xf32>
    %34 = vector.broadcast %32 : vector<1x2xf32> to vector<8x2xf32>
    %35 = arith.mulf %33, %34 : vector<8x2xf32>
    %36 = arith.addf %30, %35 : vector<8x2xf32>
    %37 = vector.extract_strided_slice %3 {offsets = [0, 1], sizes = [8, 1], strides = [1, 1]} : vector<8x4xf32> to vector<8x1xf32>
    %38 = vector.extract_strided_slice %1 {offsets = [1, 0], sizes = [1, 2], strides = [1, 1]} : vector<4x2xf32> to vector<1x2xf32>
    %39 = vector.broadcast %37 : vector<8x1xf32> to vector<8x2xf32>
    %40 = vector.broadcast %38 : vector<1x2xf32> to vector<8x2xf32>
    %41 = arith.mulf %39, %40 : vector<8x2xf32>
    %42 = arith.addf %36, %41 : vector<8x2xf32>
    %43 = vector.extract_strided_slice %3 {offsets = [0, 2], sizes = [8, 1], strides = [1, 1]} : vector<8x4xf32> to vector<8x1xf32>
    %44 = vector.extract_strided_slice %1 {offsets = [2, 0], sizes = [1, 2], strides = [1, 1]} : vector<4x2xf32> to vector<1x2xf32>
    %45 = vector.broadcast %43 : vector<8x1xf32> to vector<8x2xf32>
    %46 = vector.broadcast %44 : vector<1x2xf32> to vector<8x2xf32>
    %47 = arith.mulf %45, %46 : vector<8x2xf32>
    %48 = arith.addf %42, %47 : vector<8x2xf32>
    %49 = vector.extract_strided_slice %3 {offsets = [0, 3], sizes = [8, 1], strides = [1, 1]} : vector<8x4xf32> to vector<8x1xf32>
    %50 = vector.extract_strided_slice %1 {offsets = [3, 0], sizes = [1, 2], strides = [1, 1]} : vector<4x2xf32> to vector<1x2xf32>
    %51 = vector.broadcast %49 : vector<8x1xf32> to vector<8x2xf32>
    %52 = vector.broadcast %50 : vector<1x2xf32> to vector<8x2xf32>
    %53 = arith.mulf %51, %52 : vector<8x2xf32>
    %54 = arith.addf %48, %53 : vector<8x2xf32>
    %55 = tpu.iota {dimensions = array<i32: 0>} : vector<8x2xi32>
    %cst = arith.constant -2.000000e+01 : f32
    %cst_9 = arith.constant 2.000000e+00 : f32
    %56 = vector.broadcast %cst : f32 to vector<8x2xf32>
    %57 = arith.maximumf %56, %54 : vector<8x2xf32>
    %58 = vector.broadcast %cst_9 : f32 to vector<8x2xf32>
    %59 = arith.minimumf %58, %57 : vector<8x2xf32>
    %60 = math.exp %59 : vector<8x2xf32>
    %c4_i32 = arith.constant 4 : i32
    %61 = vector.broadcast %c4_i32 : i32 to vector<8x2xi32>
    %62 = arith.cmpi slt, %55, %61 : vector<8x2xi32>
    %63 = arith.select %62, %54, %60 : vector<8x2xi1>, vector<8x2xf32>
    %c0_10 = arith.constant 0 : index
    %c0_11 = arith.constant 0 : index
    %64 = vector.load %arg6[%c0_10, %c0_11] : memref<8x2xf32, #tpu.memory_space<vmem>>, vector<8x2xf32>
    tpu.vector_store %arg6[%c0_10, %c0_11], %63 {strides = array<i32>} : memref<8x2xf32, #tpu.memory_space<vmem>>, vector<8x2xf32>,
    return
  }
  func.func @transform_0(%arg0: i32) -> (i32, i32) {
    %c0_i32 = arith.constant 0 : i32
    %c0_i32_0 = arith.constant 0 : i32
    return %c0_i32, %arg0 : i32, i32
  }
  func.func @transform_1(%arg0: i32) -> (i32, i32) {
    %c0_i32 = arith.constant 0 : i32
    %c0_i32_0 = arith.constant 0 : i32
    return %c0_i32, %arg0 : i32, i32
  }
  func.func @transform_2(%arg0: i32) -> (i32, i32) {
    %c0_i32 = arith.constant 0 : i32
    %c0_i32_0 = arith.constant 0 : i32
    %c0_i32_1 = arith.constant 0 : i32
    return %c0_i32, %c0_i32_0 : i32, i32
  }
  func.func @transform_3(%arg0: i32) -> (i32, i32) {
    %c0_i32 = arith.constant 0 : i32
    %c0_i32_0 = arith.constant 0 : i32
    %c0_i32_1 = arith.constant 0 : i32
    return %c0_i32, %c0_i32_0 : i32, i32
  }
  func.func @transform_4(%arg0: i32) -> (i32, i32) {
    %c0_i32 = arith.constant 0 : i32
    %c0_i32_0 = arith.constant 0 : i32
    %c0_i32_1 = arith.constant 0 : i32
    return %c0_i32, %c0_i32_0 : i32, i32
  }
  func.func @transform_5(%arg0: i32) -> (i32, i32) {
    %c0_i32 = arith.constant 0 : i32
    %c0_i32_0 = arith.constant 0 : i32
    return %c0_i32, %arg0 : i32, i32
  }
}

</mosaic_0001>

<llo_original>
// kernel: tpu_custom_call.1
$region0: #{tpu_custom_call.1}
  #allocation0 [shape = 'u32[]', space=smem, size = 0x4, offset = 0x4, fixed_abs, tag = 'smem constant byte address 0x4 - core index']
  #allocation1 [shape = 'u32[144,128]{1,0:T(1,128)}', space=vmem, size = 0x12000, scoped, tag = 'internal scratch']
  %s0 = inlined_call_operand.vmem [shape: f32[4,2], index: 0, kind: input, shape index: {}]
  %s1 = inlined_call_operand.vmem [shape: f32[4,2], index: 1, kind: input, shape index: {}]
  %s2 = inlined_call_operand.vmem [shape: f32[8,4], index: 2, kind: input, shape index: {}]
  %s3 = inlined_call_operand.vmem [shape: f32[8,4], index: 3, kind: input, shape index: {}]
  %s4 = inlined_call_operand.vmem [shape: f32[8,1], index: 4, kind: input, shape index: {}]
  %s5 = inlined_call_operand.vmem [shape: f32[8,2], index: 5, kind: output, shape index: {}]
  %s6 = sld [smem:[#allocation0]]
  $region30: #{tpu_custom_call.1} parent=0
    _
  %s8 = ssub.s32 1, %s6
  %s9 = scalar_select 0, %s8, %s6
  // Predicated region
  $region2: #{tpu_custom_call.1} parent=0 // pred_check
    _
  $region3: #{tpu_custom_call.1} parent=0 // pred_check_branch
    %11 = sbr.rel (0) target = $region5
  $region4: #{tpu_custom_call.1} parent=0 // pred_region
    _
  $region5: #{tpu_custom_call.1} parent=0 // pred_fallthru
    _
  // Predicated region
  $region6: #{tpu_custom_call.1} parent=0 // pred_check
    _
  $region7: #{tpu_custom_call.1} parent=0 // pred_check_branch
    %13 = sbr.rel (0) target = $region9
  $region8: #{tpu_custom_call.1} parent=0 // pred_region
    _
  $region9: #{tpu_custom_call.1} parent=0 // pred_fallthru
    _
  // Predicated region
  $region10: #{tpu_custom_call.1} parent=0 // pred_check
    _
  $region11: #{tpu_custom_call.1} parent=0 // pred_check_branch
    %15 = sbr.rel (0) target = $region13
  $region12: #{tpu_custom_call.1} parent=0 // pred_region
    _
  $region13: #{tpu_custom_call.1} parent=0 // pred_fallthru
    _
  // Predicated region
  $region14: #{tpu_custom_call.1} parent=0 // pred_check
    _
  $region15: #{tpu_custom_call.1} parent=0 // pred_check_branch
    %17 = sbr.rel (0) target = $region17
  $region16: #{tpu_custom_call.1} parent=0 // pred_region
    _
  $region17: #{tpu_custom_call.1} parent=0 // pred_fallthru
    _
  // Predicated region
  $region18: #{tpu_custom_call.1} parent=0 // pred_check
    _
  $region19: #{tpu_custom_call.1} parent=0 // pred_check_branch
    %19 = sbr.rel (0) target = $region21
  $region20: #{tpu_custom_call.1} parent=0 // pred_region
    _
  $region21: #{tpu_custom_call.1} parent=0 // pred_fallthru
    _
  %v20 = vld [vmem:[%s0] sm:$0xf]
  %v21 = vld [vmem:[%s1] sm:$0xf]
  %v22 = vld [vmem:[%s2] sm:$0xff]
  %v23 = vld [vmem:[%s3] sm:$0xff]
  %v24 = vld [vmem:[%s4] sm:$0xff]
  %26 = vset.pattern.permute.xlu0 0
  %27 = vperm.xlu0 %26, %v24
  %v28 = vpop.permute.xlu0 %27
  %31 = vset.pattern.permute.xlu0 0
  %32 = vperm.xlu0 %31, %v22
  %v33 = vpop.permute.xlu0 %32
  %v35 = vlaneseq
  %v36 = vshrl.u32 %v35, 7
  %v37 = vsub.s32 0, %v36
  %v38 = vrot.slane %v20, %v37
  %v39 = vmul.f32 %v33, %v38
  %v40 = vadd.f32 %v28, %v39
  %41 = vset.pattern.permute.xlu0 1
  %42 = vperm.xlu0 %41, %v22
  %v43 = vpop.permute.xlu0 %42
  %v45 = vlaneseq
  %v46 = vshrl.u32 %v45, 7
  %v47 = vsub.s32 1, %v46
  %v48 = vrot.slane %v20, %v47
  %v49 = vmul.f32 %v43, %v48
  %v50 = vadd.f32 %v40, %v49
  %51 = vset.pattern.permute.xlu0 2
  %52 = vperm.xlu0 %51, %v22
  %v53 = vpop.permute.xlu0 %52
  %v55 = vlaneseq
  %v56 = vshrl.u32 %v55, 7
  %v57 = vsub.s32 2, %v56
  %v58 = vrot.slane %v20, %v57
  %v59 = vmul.f32 %v53, %v58
  %v60 = vadd.f32 %v50, %v59
  %61 = vset.pattern.permute.xlu0 3
  %62 = vperm.xlu0 %61, %v22
  %v63 = vpop.permute.xlu0 %62
  %v65 = vlaneseq
  %v66 = vshrl.u32 %v65, 7
  %v67 = vsub.s32 3, %v66
  %v68 = vrot.slane %v20, %v67
  %v69 = vmul.f32 %v63, %v68
  %v70 = vadd.f32 %v60, %v69
  %72 = vset.pattern.permute.xlu0 0
  %73 = vperm.xlu0 %72, %v23
  %v74 = vpop.permute.xlu0 %73
  %v76 = vlaneseq
  %v77 = vshrl.u32 %v76, 7
  %v78 = vsub.s32 0, %v77
  %v79 = vrot.slane %v21, %v78
  %v80 = vmul.f32 %v74, %v79
  %v81 = vadd.f32 %v70, %v80
  %82 = vset.pattern.permute.xlu0 1
  %83 = vperm.xlu0 %82, %v23
  %v84 = vpop.permute.xlu0 %83
  %v86 = vlaneseq
  %v87 = vshrl.u32 %v86, 7
  %v88 = vsub.s32 1, %v87
  %v89 = vrot.slane %v21, %v88
  %v90 = vmul.f32 %v84, %v89
  %v91 = vadd.f32 %v81, %v90
  %92 = vset.pattern.permute.xlu0 2
  %93 = vperm.xlu0 %92, %v23
  %v94 = vpop.permute.xlu0 %93
  %v96 = vlaneseq
  %v97 = vshrl.u32 %v96, 7
  %v98 = vsub.s32 2, %v97
  %v99 = vrot.slane %v21, %v98
  %v100 = vmul.f32 %v94, %v99
  %v101 = vadd.f32 %v91, %v100
  %102 = vset.pattern.permute.xlu0 3
  %103 = vperm.xlu0 %102, %v23
  %v104 = vpop.permute.xlu0 %103
  %v106 = vlaneseq
  %v107 = vshrl.u32 %v106, 7
  %v108 = vsub.s32 3, %v107
  %v109 = vrot.slane %v21, %v108
  %v110 = vmul.f32 %v104, %v109
  %v111 = vadd.f32 %v101, %v110
  %v112 = vlaneseq
  %v113 = vshrl.u32 %v112, 7
  %v114 = vmax.f32 %v111, -20.0
  %v115 = vmin.f32 %v114, 2.0
  %v116 = vmul.f32 %v115, 1.442695
  %v117 = vpow.pop %v116
  %vm118 = vcmp.lt.s32.totalorder %v113, 4
  %v119 = vsel %vm118, %v111, %v117
  %vm120 = vcmask 15360
  %121 = vst.msk [vmem:[%s5] sm:$0xff] %vm120, %v119
  // Predicated region
  $region22: #{tpu_custom_call.1} parent=0 // pred_check
    _
  $region23: #{tpu_custom_call.1} parent=0 // pred_check_branch
    %123 = sbr.rel (0) target = $region25
  $region24: #{tpu_custom_call.1} parent=0 // pred_region
    _
  $region25: #{tpu_custom_call.1} parent=0 // pred_fallthru
    _
  // Predicated region
  $region26: #{tpu_custom_call.1} parent=0 // pred_check
    _
  $region27: #{tpu_custom_call.1} parent=0 // pred_check_branch
    %125 = sbr.rel (0) target = $region29
  $region28: #{tpu_custom_call.1} parent=0 // pred_region
    _
  $region29: #{tpu_custom_call.1} parent=0 // pred_fallthru
    _

</llo_original>
